<compile_context>
chip_gen: v7x
topology: tpu7x:2x2x1
jax: 0.10.0
libtpu: 0.0.40
codegen_flags: <defaults>
</compile_context>

<pallas_src>
import functools

import jax
import jax.numpy as jnp
from jax.experimental import pallas as pl
from jax.experimental.pallas import tpu as pltpu


def _cdiv(a, b):
    return -(-a // b)


def _round_up(x, m):
    return ((x + m - 1) // m) * m


def _poly1_ce_kernel(logits_ref, labels_ref, *rest, epsilon, n_valid, tile_n,
                     has_weight, ragged):
    """Accumulates sum over rows of (CE + eps * (1 - pt)) into out_ref."""
    if has_weight:
        weight_ref, out_ref = rest
    else:
        (out_ref,) = rest
        weight_ref = None

    i = pl.program_id(0)  # batch-tile reduction axis

    @pl.when(i == 0)
    def _init():
        out_ref[...] = jnp.zeros_like(out_ref)

    logits = logits_ref[...].astype(jnp.float32)               # [T, C]
    labels = labels_ref[...]                                    # [T, 1] int32

    # Boolean class mask from a lane iota compared against the label column.
    class_ids = jax.lax.broadcasted_iota(jnp.int32, logits.shape, 1)
    mask = class_ids == labels                                  # [T, C] bool

    # Numerically-stable log-softmax pieces; never materialize the full
    # probability tensor.
    m = jnp.max(logits, axis=-1, keepdims=True)                 # [T, 1]
    shifted = logits - m                                        # [T, C]
    denom = jnp.sum(jnp.exp(shifted), axis=-1, keepdims=True)   # [T, 1]
    true_shift = jnp.sum(jnp.where(mask, shifted, 0.0),
                         axis=-1, keepdims=True)                # [T, 1]

    nll = jnp.log(denom) - true_shift                           # [T, 1]
    # pt = softmax prob of the true class: tiny [T,1] EUP exp + near-free
    # approximate reciprocal (instead of a second exp of logp_true).
    pt = jnp.exp(true_shift) * pl.reciprocal(denom, approx=True)

    if has_weight:
        weight = weight_ref[...].astype(jnp.float32)            # [1, C]
        w_t = jnp.sum(jnp.where(mask, weight, 0.0),
                      axis=-1, keepdims=True)                   # [T, 1]
        ce = nll * w_t
    else:
        ce = nll

    # Fused per-row poly1 term; single row reduction per tile.
    poly1 = ce + epsilon * (1.0 - pt)                           # [T, 1]

    def _accumulate(rows):
        # (1,1) broadcast into the lane-dense (1,128) accumulator.
        out_ref[...] += jnp.sum(rows, axis=0, keepdims=True)

    if ragged:
        last = pl.num_programs(0) - 1

        @pl.when(i == last)
        def _tail():
            # Only the final (partial) tile pays for the validity masking.
            row_ids = i * tile_n + jax.lax.broadcasted_iota(
                jnp.int32, (tile_n, 1), 0)
            _accumulate(jnp.where(row_ids < n_valid, poly1, 0.0))

        @pl.when(i != last)
        def _body():
            _accumulate(poly1)
    else:
        _accumulate(poly1)


def poly1_cross_entropy_loss(logits, labels, *, num_classes, epsilon=1.0,
                             weight=None, reduction='mean', tile_n=None):
    """Pallas-backed Poly1CrossEntropyLoss.forward (reduction in {'mean','sum'})."""
    if reduction not in ('mean', 'sum'):
        # TODO(synk): reduction='none' needs a per-row [N] output spec; not implemented.
        raise NotImplementedError("only reduction='mean' or 'sum' is implemented")

    n, c = logits.shape
    assert c == num_classes

    itemsize = jnp.dtype(logits.dtype).itemsize
    if tile_n is None:
        # Byte-targeted tile: ~2 MiB of f32 working tile per grid step.  With
        # ~5-6 f32 [T,C] temporaries plus the double-buffered input this keeps
        # the total VMEM footprint well under v7x's 64 MiB per-core VMEM while
        # still giving long DMAs on v5e/v6e (HBM-bandwidth bound kernel).
        f32_tile_budget = 2 * 1024 * 1024
        tile_n = f32_tile_budget // (num_classes * 4)
    tile_n = int(tile_n)
    tile_n = min(tile_n, _round_up(n, 8))
    tile_n = max(8, (tile_n // 8) * 8)

    num_tiles = _cdiv(n, tile_n)
    ragged = (n % tile_n) != 0
    # TODO(synk): vocab-scale num_classes needs a class-chunked online-softmax
    # path (extra class grid axis + running max/denominator scratch); not implemented.

    labels2d = labels.reshape(n, 1).astype(jnp.int32)
    has_weight = weight is not None

    kernel = functools.partial(
        _poly1_ce_kernel, epsilon=float(epsilon), n_valid=int(n),
        tile_n=int(tile_n), has_weight=has_weight, ragged=bool(ragged))

    in_specs = [
        pl.BlockSpec((tile_n, num_classes), lambda i: (i, 0)),  # logits
        pl.BlockSpec((tile_n, 1), lambda i: (i, 0)),            # labels
    ]
    args = [logits, labels2d]
    if has_weight:
        in_specs.append(pl.BlockSpec((1, num_classes), lambda i: (0, 0)))
        args.append(weight.reshape(1, num_classes))

    # VMEM budget: double-buffered input tiles + ~6 f32 [T,C] temporaries
    # + slack.  Clamp to [32 MiB, 48 MiB]: above the scoped defaults on every
    # generation, below the safe ceiling for v7x's 64 MiB physical VMEM.
    in_buf_bytes = tile_n * num_classes * itemsize
    f32_tile_bytes = tile_n * num_classes * 4
    est_vmem = 2 * in_buf_bytes + 6 * f32_tile_bytes + (1 << 20)
    vmem_limit = int(min(48 * 1024 * 1024, max(est_vmem, 32 * 1024 * 1024)))

    partials = pl.pallas_call(
        kernel,
        out_shape=jax.ShapeDtypeStruct((1, 128), jnp.float32),
        grid=(num_tiles,),
        in_specs=in_specs,
        out_specs=pl.BlockSpec((1, 128), lambda i: (0, 0)),
        compiler_params=pltpu.CompilerParams(
            dimension_semantics=("arbitrary",),
            vmem_limit_bytes=vmem_limit),
    )(*args)

    total = partials[0, 0]
    if reduction == 'mean':
        # Matches the PyTorch module: cross_entropy(reduction='none') then
        # .mean(), i.e. divide by N even when class weights are supplied.
        return total / n
    return total


def _reference_poly1(logits, labels, num_classes, epsilon, weight=None,
                     reduction='mean'):
    # Pure-JAX reference of the PyTorch forward.
    logits = logits.astype(jnp.float32)
    onehot = jax.nn.one_hot(labels, num_classes, dtype=jnp.float32)
    probs = jax.nn.softmax(logits, axis=-1)
    pt = jnp.sum(onehot * probs, axis=-1)
    nll = -jnp.sum(onehot * jax.nn.log_softmax(logits, axis=-1), axis=-1)
    if weight is not None:
        w_t = jnp.sum(onehot * weight.astype(jnp.float32)[None, :], axis=-1)
        nll = nll * w_t
    poly1 = nll + epsilon * (1.0 - pt)
    if reduction == 'mean':
        return jnp.mean(poly1)
    if reduction == 'sum':
        return jnp.sum(poly1)
    return poly1


if __name__ == "__main__":
    key = jax.random.PRNGKey(0)
    k1, k2, k3, k4, k5, k6 = jax.random.split(key, 6)

    # Tolerance: pt uses the EUP approximate reciprocal (~1e-4 relative),
    # everything else is exact stable log-softmax in f32.
    RTOL = ATOL = 2e-3

    # Case 1: default weight=None, reduction='mean' (matches the module demo).
    NUM_CLASSES, N, EPSILON = 32, 8, 1.0
    logits = jax.random.normal(k1, (N, NUM_CLASSES), dtype=jnp.float32)
    labels = jax.random.randint(k2, (N,), 0, NUM_CLASSES, dtype=jnp.int32)
    loss = poly1_cross_entropy_loss(logits, labels, num_classes=NUM_CLASSES,
                                    epsilon=EPSILON)
    loss = jax.block_until_ready(loss)
    ref = _reference_poly1(logits, labels, NUM_CLASSES, EPSILON)
    assert jnp.allclose(loss, ref, rtol=RTOL, atol=ATOL), (loss, ref)

    # Case 2: class weights + multi-tile grid (exercises the accumulator
    # pattern and the weighted path) with a small forced tile.
    N2, C2, EPS2 = 40, 16, 2.0
    logits2 = jax.random.normal(k3, (N2, C2), dtype=jnp.float32)
    labels2 = jax.random.randint(k4, (N2,), 0, C2, dtype=jnp.int32)
    w2 = jnp.linspace(0.5, 1.5, C2, dtype=jnp.float32)
    loss2 = poly1_cross_entropy_loss(logits2, labels2, num_classes=C2,
                                     epsilon=EPS2, weight=w2, tile_n=8)
    loss2 = jax.block_until_ready(loss2)
    ref2 = _reference_poly1(logits2, labels2, C2, EPS2, weight=w2)
    assert jnp.allclose(loss2, ref2, rtol=RTOL, atol=ATOL), (loss2, ref2)

    # Case 3: ragged batch (N not a multiple of tile_n) with reduction='sum'
    # — exercises the no-pad path and the pl.when-gated tail masking.
    N3, C3, EPS3 = 37, 24, 1.0
    logits3 = jax.random.normal(k5, (N3, C3), dtype=jnp.float32)
    labels3 = jax.random.randint(k6, (N3,), 0, C3, dtype=jnp.int32)
    loss3 = poly1_cross_entropy_loss(logits3, labels3, num_classes=C3,
                                     epsilon=EPS3, reduction='sum', tile_n=16)
    loss3 = jax.block_until_ready(loss3)
    ref3 = _reference_poly1(logits3, labels3, C3, EPS3, reduction='sum')
    assert jnp.allclose(loss3, ref3, rtol=RTOL, atol=ATOL), (loss3, ref3)

    print("KERNEL_OK")
</pallas_src>

<mosaic_0001>
module attributes {stable_mosaic.version = 11 : i64} {
  func.func @_poly1_ce_kernel(%arg0: i32, %arg1: memref<8x32xf32, #tpu.memory_space<vmem>>, %arg2: memref<8x1xi32, #tpu.memory_space<vmem>>, %arg3: memref<1x128xf32, #tpu.memory_space<vmem>>) attributes {dimension_semantics = [#tpu.dimension_semantics<arbitrary>], iteration_bounds = array<i64: 1>, scalar_prefetch = 0 : i64, scratch_operands = 0 : i64, tpu.core_type = #tpu.core_type<tc>, window_params = [{transform_indices = @transform_0, window_bounds = array<i64: 8, 32>}, {transform_indices = @transform_1, window_bounds = array<i64: 8, 1>}, {pipeline_mode = #tpu.pipeline_mode<synchronous>, transform_indices = @transform_2, window_bounds = array<i64: 1, 128>}]} {
    %c0_i32 = arith.constant 0 : i32
    %0 = arith.cmpi eq, %arg0, %c0_i32 : i32
    %1 = arith.extui %0 : i1 to i32
    %c0_i32_0 = arith.constant 0 : i32
    %2 = arith.cmpi ne, %1, %c0_i32_0 : i32
    scf.if %2 {
      %cst_14 = arith.constant 0.000000e+00 : f32
      %35 = vector.broadcast %cst_14 : f32 to vector<1x128xf32>
      %c0_15 = arith.constant 0 : index
      %c0_16 = arith.constant 0 : index
      %36 = vector.load %arg3[%c0_15, %c0_16] : memref<1x128xf32, #tpu.memory_space<vmem>>, vector<1x128xf32>
      tpu.vector_store %arg3[%c0_15, %c0_16], %35 {strides = array<i32>} : memref<1x128xf32, #tpu.memory_space<vmem>>, vector<1x128xf32>,
    } else {
    }
    %c0 = arith.constant 0 : index
    %c0_1 = arith.constant 0 : index
    %3 = vector.load %arg1[%c0, %c0_1] : memref<8x32xf32, #tpu.memory_space<vmem>>, vector<8x32xf32>
    %c0_2 = arith.constant 0 : index
    %c0_3 = arith.constant 0 : index
    %4 = vector.load %arg2[%c0_2, %c0_3] : memref<8x1xi32, #tpu.memory_space<vmem>>, vector<8x1xi32>
    %5 = tpu.iota {dimensions = array<i32: 1>} : vector<8x32xi32>
    %6 = vector.broadcast %4 : vector<8x1xi32> to vector<8x32xi32>
    %7 = arith.cmpi eq, %5, %6 : vector<8x32xi32>
    %cst = arith.constant dense<0xFF800000> : vector<8xf32>
    %8 = vector.multi_reduction <maximumf>, %3, %cst [1] : vector<8x32xf32> to vector<8xf32>
    %9 = vector.shape_cast %8 : vector<8xf32> to vector<8x1xf32>
    %10 = vector.broadcast %9 : vector<8x1xf32> to vector<8x32xf32>
    %11 = arith.subf %3, %10 : vector<8x32xf32>
    %12 = math.exp %11 : vector<8x32xf32>
    %cst_4 = arith.constant dense<0.000000e+00> : vector<8xf32>
    %13 = vector.multi_reduction <add>, %12, %cst_4 [1] : vector<8x32xf32> to vector<8xf32>
    %14 = vector.shape_cast %13 : vector<8xf32> to vector<8x1xf32>
    %cst_5 = arith.constant 0.000000e+00 : f32
    %15 = vector.broadcast %cst_5 : f32 to vector<8x32xf32>
    %16 = arith.select %7, %11, %15 : vector<8x32xi1>, vector<8x32xf32>
    %cst_6 = arith.constant dense<0.000000e+00> : vector<8xf32>
    %17 = vector.multi_reduction <add>, %16, %cst_6 [1] : vector<8x32xf32> to vector<8xf32>
    %18 = vector.shape_cast %17 : vector<8xf32> to vector<8x1xf32>
    %19 = math.log %14 : vector<8x1xf32>
    %20 = arith.subf %19, %18 : vector<8x1xf32>
    %21 = math.exp %18 : vector<8x1xf32>
    %22 = tpu.reciprocal %14 {approx = true} : vector<8x1xf32> -> vector<8x1xf32>
    %23 = arith.mulf %21, %22 : vector<8x1xf32>
    %cst_7 = arith.constant 1.000000e+00 : f32
    %24 = vector.broadcast %cst_7 : f32 to vector<8x1xf32>
    %25 = arith.subf %24, %23 : vector<8x1xf32>
    %cst_8 = arith.constant 1.000000e+00 : f32
    %26 = vector.broadcast %cst_8 : f32 to vector<8x1xf32>
    %27 = arith.mulf %26, %25 : vector<8x1xf32>
    %28 = arith.addf %20, %27 : vector<8x1xf32>
    %c0_9 = arith.constant 0 : index
    %c0_10 = arith.constant 0 : index
    %29 = vector.load %arg3[%c0_9, %c0_10] : memref<1x128xf32, #tpu.memory_space<vmem>>, vector<1x128xf32>
    %cst_11 = arith.constant dense<0.000000e+00> : vector<1xf32>
    %30 = vector.multi_reduction <add>, %28, %cst_11 [0] : vector<8x1xf32> to vector<1xf32>
    %31 = vector.shape_cast %30 : vector<1xf32> to vector<1x1xf32>
    %32 = vector.broadcast %31 : vector<1x1xf32> to vector<1x128xf32>
    %33 = arith.addf %29, %32 : vector<1x128xf32>
    %c0_12 = arith.constant 0 : index
    %c0_13 = arith.constant 0 : index
    %34 = vector.load %arg3[%c0_12, %c0_13] : memref<1x128xf32, #tpu.memory_space<vmem>>, vector<1x128xf32>
    tpu.vector_store %arg3[%c0_12, %c0_13], %33 {strides = array<i32>} : memref<1x128xf32, #tpu.memory_space<vmem>>, vector<1x128xf32>,
    return
  }
  func.func @transform_0(%arg0: i32) -> (i32, i32) {
    %c0_i32 = arith.constant 0 : i32
    %c0_i32_0 = arith.constant 0 : i32
    return %arg0, %c0_i32 : i32, i32
  }
  func.func @transform_1(%arg0: i32) -> (i32, i32) {
    %c0_i32 = arith.constant 0 : i32
    %c0_i32_0 = arith.constant 0 : i32
    return %arg0, %c0_i32 : i32, i32
  }
  func.func @transform_2(%arg0: i32) -> (i32, i32) {
    %c0_i32 = arith.constant 0 : i32
    %c0_i32_0 = arith.constant 0 : i32
    %c0_i32_1 = arith.constant 0 : i32
    return %c0_i32, %c0_i32_0 : i32, i32
  }
}

</mosaic_0001>

<llo_original>
// kernel: tpu_custom_call.1
$region0: #{tpu_custom_call.1}
  #allocation0 [shape = 'u32[]', space=smem, size = 0x4, offset = 0x4, fixed_abs, tag = 'smem constant byte address 0x4 - core index']
  #allocation1 [shape = 'u32[144,128]{1,0:T(1,128)}', space=vmem, size = 0x12000, scoped, tag = 'internal scratch']
  %s0 = inlined_call_operand.vmem [shape: f32[8,32], index: 0, kind: input, shape index: {}]
  %s1 = inlined_call_operand.vmem [shape: s32[8,1], index: 1, kind: input, shape index: {}]
  %s2 = inlined_call_operand.hbm [shape: f32[1,128], index: 2, kind: output, shape index: {}]
  %s3 = sld [smem:[#allocation0]]
  $region22: #{tpu_custom_call.1} parent=0
    _
  %s5 = ssub.s32 1, %s3
  %s6 = scalar_select 0, %s5, %s3
  $region1: #{tpu_custom_call.1} parent=0
    #allocation2 [shape = 'u8[512]{0}', space=vmem, size = 0x400, scoped, tag = 'output window, operand 0, single buffered']
    #allocation3 [shape = 's32[1]{0}', space=sflag, size = 0x4, scoped, tag = 'scoped memory for tpu_custom_call.1']
    %7 = vsyncpa [#allocation3], 0
    // Predicated region
    $region2: #{tpu_custom_call.1} parent=1 // pred_check
      _
    $region3: #{tpu_custom_call.1} parent=1 // pred_check_branch
      %9 = sbr.rel (0) target = $region5
    $region4: #{tpu_custom_call.1} parent=1 // pred_region
      _
    $region5: #{tpu_custom_call.1} parent=1 // pred_fallthru
      _
    // Predicated region
    $region6: #{tpu_custom_call.1} parent=1 // pred_check
      _
    $region7: #{tpu_custom_call.1} parent=1 // pred_check_branch
      %11 = sbr.rel (0) target = $region9
    $region8: #{tpu_custom_call.1} parent=1 // pred_region
      _
    $region9: #{tpu_custom_call.1} parent=1 // pred_fallthru
      _
    %p12 = scmp.eq.s32.totalorder 0, 0
    // Predicated region
    $region10: #{tpu_custom_call.1} parent=1 // pred_check
      %p13 = pneg %p12
    $region11: #{tpu_custom_call.1} parent=1 // pred_check_branch
      %15 = sbr.rel (%p13) target = $region13
    $region12: #{tpu_custom_call.1} parent=1 // pred_region
      %16 = vst [vmem:[#allocation2] sm:$0x1] 0.0
    $region13: #{tpu_custom_call.1} parent=1 // pred_fallthru
      _
    %v17 = vld [vmem:[%s0] sm:$0xff]
    %v18 = vld [vmem:[%s1] sm:$0xff]
    %v19 = vlaneseq
    %v20 = vand.u32 %v19, 127
    %21 = vset.pattern.permute.xlu0 0
    %22 = vperm.xlu0 %21, %v18
    %v23 = vpop.permute.xlu0 %22
    %vm24 = vcmp.eq.s32.totalorder %v20, %v23
    %vm25 = vcmask 261120
    %v26 = vsel %vm25, %v17, -inf
    %27 = vmax.xlane.f32.xlu0 %v26
    %v28 = vpop.xlane.xlu0 %27
    %v29 = vsub.f32 %v17, %v28
    %v30 = vmul.f32 %v29, 1.442695
    %v31 = vpow.pop %v30
    %v32 = vsel %vm25, %v31, 0.0
    %33 = vadd.xlane.f32.xlu0 %v32
    %v34 = vpop.xlane.xlu0 %33
    %v35 = vsel %vm24, %v29, 0.0
    %v36 = vsel %vm25, %v35, 0.0
    %37 = vadd.xlane.f32.xlu0 %v36
    %v38 = vpop.xlane.xlu0 %37
    %v39 = vlog2.pop %v34
    %v40 = vmul.f32 %v39, 0.6931472
    %v41 = vsub.f32 %v40, %v38
    %v42 = vmul.f32 %v38, 1.442695
    %v43 = vpow.pop %v42
    %v44 = vrcp.pop %v34
    %v45 = vmul.f32 %v43, %v44
    %v46 = vsub.f32 1.0, %v45
    %v47 = vadd.f32 %v41, %v46
    %v48 = vld [vmem:[#allocation2] sm:$0x1]
    %v49 = vrot.slane %v47, 4
    %v50 = vadd.f32 %v47, %v49
    %v51 = vrot.slane %v50, 2
    %v52 = vadd.f32 %v50, %v51
    %v53 = vrot.slane %v52, 1
    %v54 = vadd.f32 %v52, %v53
    %v55 = vadd.f32 %v48, %v54
    %56 = vst [vmem:[#allocation2] sm:$0x1] %v55
    // Predicated region
    $region14: #{tpu_custom_call.1} parent=1 // pred_check
      _
    $region15: #{tpu_custom_call.1} parent=1 // pred_check_branch
      %58 = sbr.rel (0) target = $region17
    $region16: #{tpu_custom_call.1} parent=1 // pred_region
      %s60 = ssub.s32 16, 16
      %61 = vsyncadd [#allocation3], %s60
      %s63 = sshll.u32 [#allocation2], 4
      %s64 = int_to_ptr.vmem [resolvable:$true] %s63
      %66 = dma.vmem_to_hbm [thread:$0]  %s64, 16, %s2, [#allocation3]
    $region17: #{tpu_custom_call.1} parent=1 // pred_fallthru
      _
    // Predicated region
    $region18: #{tpu_custom_call.1} parent=1 // pred_check
      _
    $region19: #{tpu_custom_call.1} parent=1 // pred_check_branch
      %68 = sbr.rel (0) target = $region21
    $region20: #{tpu_custom_call.1} parent=1 // pred_region
      %69 = dma.done [#allocation3], 16
    $region21: #{tpu_custom_call.1} parent=1 // pred_fallthru
      _
    %70 = vsyncpa [#allocation3], 1

</llo_original>
